<compile_context>
chip_gen: v6e
topology: v6e:2x2x1
jax: 0.10.0
libtpu: 0.0.40
codegen_flags: <defaults>
</compile_context>

<pallas_src>
import math

import numpy as np
import jax
import jax.numpy as jnp
from jax.experimental import pallas as pl
from jax.experimental.pallas import tpu as pltpu


# ----------------------------------------------------------------------------
# Kernel: two MXU matmuls + ReLU (normalization already folded into A_kron)
# ----------------------------------------------------------------------------
def _make_kernel(adj_first):
    def kernel(a_ref, x_ref, w_ref, o_ref):
        # a_ref : [C*Bt, C*Bt]  block-diag-by-batch normalized adjacency (shared)
        # x_ref : [C*Bt, E]     this tile's features, rows = (channel, batch)
        # w_ref : [E, F_pad]    shared weight, zero-padded to lane-dense F_pad
        a = a_ref[...]
        x = x_ref[...]
        w = w_ref[...]
        if adj_first:            # E <= F_pad: contract the small dim first
            h = jnp.dot(a, x, preferred_element_type=jnp.float32)        # [C*Bt, E]
            y = jnp.dot(h.astype(w.dtype), w,
                        preferred_element_type=jnp.float32)              # [C*Bt, F_pad]
        else:                    # F_pad < E: weight matmul first (fewer FLOPs)
            xw = jnp.dot(x, w, preferred_element_type=jnp.float32)       # [C*Bt, F_pad]
            y = jnp.dot(a, xw.astype(a.dtype),
                        preferred_element_type=jnp.float32)              # [C*Bt, F_pad]
        # TODO(synk): training-mode nn.Dropout(p) would mask `y` here via
        # pltpu.prng_seed + pltpu.prng_random_bits; eval mode == identity.
        o_ref[...] = jnp.maximum(y, 0.0)
    return kernel


def _choose_batch_tile(batch, channels):
    """Batch-tile size Bt and padded batch so each MXU call sees ~256 rows.

    Keeping C*Bt <= 256 also keeps the block-diagonal kron(A_norm, I_Bt) within
    a single MXU K-tile, so its zero padding costs nothing extra."""
    bt = max(1, min(batch, 256 // max(channels, 1)))
    b_pad = -(-batch // bt) * bt
    return bt, b_pad


# ----------------------------------------------------------------------------
# Wrapper
# ----------------------------------------------------------------------------
def gcn_energy_forward(features, adj, weight, *, operand_dtype=jnp.float32):
    """features: [B, C, E], adj: [C, C], weight: [E, F] -> [B, C, F] (float32)."""
    B, C, E = features.shape
    E2, F = weight.shape
    assert E2 == E, (E2, E)

    f32 = jnp.float32
    features = features.astype(f32)
    adj = adj.astype(f32)
    weight = weight.astype(f32)

    # --- hoisted normalization: A_norm = D^-1/2 (A + I) D^-1/2, computed once ---
    a = adj + jnp.eye(C, dtype=f32)
    d = jax.lax.rsqrt(jnp.sum(a, axis=-1))
    a_norm = d[:, None] * a * d[None, :]

    # --- batch tiling: pack Bt samples per grid step as (channel, batch) rows ---
    bt, b_pad = _choose_batch_tile(B, C)
    n_tiles = b_pad // bt
    cbt = C * bt
    # Block-diagonal adjacency: kron(A_norm, I_Bt) @ x_rows applies A_norm to
    # every sample of the tile with ONE [C*Bt, C*Bt] @ [C*Bt, E] matmul.
    a_kron = jnp.kron(a_norm, jnp.eye(bt, dtype=f32)).astype(operand_dtype)

    # --- lane-dense weight / output: pad out_features to a multiple of 128 ---
    f_pad = ((F + 127) // 128) * 128
    w_pad = jnp.pad(weight, ((0, 0), (0, f_pad - F))).astype(operand_dtype)

    # --- layout plumbing (wrapper-side): x_rows[t, c*Bt + b, e] = x[t*Bt + b, c, e]
    x_p = jnp.pad(features, ((0, b_pad - B), (0, 0), (0, 0)))
    x_rows = (x_p.reshape(n_tiles, bt, C, E)
                  .transpose(0, 2, 1, 3)
                  .reshape(n_tiles, cbt, E)
                  .astype(operand_dtype))

    adj_first = E <= f_pad
    kernel = _make_kernel(adj_first)

    op_isize = jnp.dtype(operand_dtype).itemsize
    flops = 2 * n_tiles * (cbt * cbt * (E if adj_first else f_pad) + cbt * E * f_pad)
    bytes_accessed = (op_isize * (cbt * cbt + E * f_pad + n_tiles * cbt * E)
                      + 4 * n_tiles * cbt * f_pad)

    # Scoped-VMEM: only raise the limit when the working set outgrows v5e's
    # 16 MiB default; stay well under v7x's 64 MiB physical VMEM.
    # TODO(synk): very large C (adjacency-dominant regime) would additionally need
    # row/column tiling of A_norm over an "arbitrary" reduction grid axis.
    tile_bytes = (op_isize * (cbt * cbt + E * f_pad)     # resident shared operands
                  + 2 * op_isize * cbt * E               # double-buffered x tile
                  + 2 * 4 * cbt * f_pad                  # double-buffered out tile
                  + 4 * cbt * max(E, f_pad))             # f32 intermediate
    vmem_limit = None
    if tile_bytes > (14 << 20):
        vmem_limit = int(min(tile_bytes + (8 << 20), 48 << 20))

    out_rows = pl.pallas_call(
        kernel,
        grid=(n_tiles,),
        in_specs=[
            pl.BlockSpec((cbt, cbt), lambda i: (0, 0)),          # A_kron (shared)
            pl.BlockSpec((None, cbt, E), lambda i: (i, 0, 0)),   # batch tile
            pl.BlockSpec((E, f_pad), lambda i: (0, 0)),          # padded weight (shared)
        ],
        out_specs=pl.BlockSpec((None, cbt, f_pad), lambda i: (i, 0, 0)),
        out_shape=jax.ShapeDtypeStruct((n_tiles, cbt, f_pad), jnp.float32),
        compiler_params=pltpu.CompilerParams(
            dimension_semantics=("parallel",),        # shard batch tiles on v7x
            vmem_limit_bytes=vmem_limit),
        cost_estimate=pl.CostEstimate(flops=int(flops), transcendentals=0,
                                      bytes_accessed=int(bytes_accessed)),
    )(a_kron, x_rows, w_pad)

    # Un-pack: [n_tiles, C*Bt, F_pad] -> [B, C, F]
    out = (out_rows.reshape(n_tiles, C, bt, f_pad)
                    .transpose(0, 2, 1, 3)
                    .reshape(b_pad, C, f_pad))
    return out[:B, :, :F]


# ----------------------------------------------------------------------------
# Pure-JAX reference (mirrors the PyTorch forward, eval mode) for checking
# ----------------------------------------------------------------------------
def _reference(features, adj, weight):
    B, C, E = features.shape
    features = features.astype(jnp.float32)
    adj = adj.astype(jnp.float32)
    weight = weight.astype(jnp.float32)
    a = adj + jnp.eye(C, dtype=jnp.float32)
    d = jnp.power(a.sum(axis=-1), -0.5)
    D = jnp.diag(d)
    adjn = D @ a @ D
    out = jnp.einsum("ij,bje->bie", adjn, features)
    out = out @ weight
    return jnp.maximum(out, 0.0)


# ----------------------------------------------------------------------------
if __name__ == "__main__":
    B, C, E, F = 2, 4, 16, 32          # (batch, channel, energy, out_features)
    key = jax.random.PRNGKey(0)
    kx, ka, kw = jax.random.split(key, 3)

    features = jax.random.normal(kx, (B, C, E), dtype=jnp.float32)

    # symmetric non-negative adjacency (positive row degrees)
    a_raw = jax.random.uniform(ka, (C, C), dtype=jnp.float32)
    adj = 0.5 * (a_raw + a_raw.T)

    # xavier_uniform_ init for the (in_features, out_features) weight
    bound = float(np.sqrt(6.0 / (E + F)))
    weight = jax.random.uniform(kw, (E, F), jnp.float32, -bound, bound)

    ref = _reference(features, adj, weight)

    # float32 operands: strict check against the reference
    out = jax.block_until_ready(gcn_energy_forward(features, adj, weight))
    assert out.shape == (B, C, F)
    err32 = float(jnp.max(jnp.abs(out - ref)))
    assert jnp.allclose(out, ref, atol=1e-4, rtol=1e-4), f"f32 max abs err {err32}"

    # bf16 operands (v6e/v7x fast MXU path, f32 accumulation): looser tolerance
    out16 = jax.block_until_ready(
        gcn_energy_forward(features, adj, weight, operand_dtype=jnp.bfloat16))
    err16 = float(jnp.max(jnp.abs(out16 - ref)))
    assert jnp.allclose(out16, ref, atol=5e-2, rtol=5e-2), f"bf16 max abs err {err16}"

    print("KERNEL_OK")
</pallas_src>

<mosaic_0001>
module attributes {stable_mosaic.version = 11 : i64} {
  func.func @kernel(%arg0: i32, %arg1: memref<8x8xf32, #tpu.memory_space<vmem>>, %arg2: memref<1x8x16xf32, #tpu.memory_space<vmem>>, %arg3: memref<16x128xf32, #tpu.memory_space<vmem>>, %arg4: memref<1x8x128xf32, #tpu.memory_space<vmem>>) attributes {dimension_semantics = [#tpu.dimension_semantics<parallel>], iteration_bounds = array<i64: 1>, scalar_prefetch = 0 : i64, scratch_operands = 0 : i64, tpu.core_type = #tpu.core_type<tc>, window_params = [{pipeline_mode = #tpu.pipeline_mode<synchronous>, transform_indices = @transform_0, window_bounds = array<i64: 8, 8>}, {transform_indices = @transform_1, window_bounds = array<i64: 1, 8, 16>}, {pipeline_mode = #tpu.pipeline_mode<synchronous>, transform_indices = @transform_2, window_bounds = array<i64: 16, 128>}, {transform_indices = @transform_3, window_bounds = array<i64: 1, 8, 128>}]} {
    %c0 = arith.constant 0 : index
    %c0_0 = arith.constant 0 : index
    %0 = vector.load %arg1[%c0, %c0_0] : memref<8x8xf32, #tpu.memory_space<vmem>>, vector<8x8xf32>
    %c0_1 = arith.constant 0 : index
    %c0_2 = arith.constant 0 : index
    %c0_3 = arith.constant 0 : index
    %1 = vector.load %arg2[%c0_1, %c0_2, %c0_3] : memref<1x8x16xf32, #tpu.memory_space<vmem>>, vector<1x8x16xf32>
    %2 = vector.shape_cast %1 : vector<1x8x16xf32> to vector<8x16xf32>
    %c0_4 = arith.constant 0 : index
    %c0_5 = arith.constant 0 : index
    %3 = vector.load %arg3[%c0_4, %c0_5] : memref<16x128xf32, #tpu.memory_space<vmem>>, vector<16x128xf32>
    %cst = arith.constant dense<0.000000e+00> : vector<8x16xf32>
    %4 = tpu.matmul %0, %2, %cst {dimension_numbers = #tpu.dot_dimension_numbers<[1], [0], [0], [1], [0, 0, 1, 1], [], []>} : vector<8x8xf32>, vector<8x16xf32>, vector<8x16xf32> -> vector<8x16xf32>
    %cst_6 = arith.constant dense<0.000000e+00> : vector<8x128xf32>
    %5 = tpu.matmul %4, %3, %cst_6 {dimension_numbers = #tpu.dot_dimension_numbers<[1], [0], [0], [1], [0, 0, 1, 1], [], []>} : vector<8x16xf32>, vector<16x128xf32>, vector<8x128xf32> -> vector<8x128xf32>
    %cst_7 = arith.constant 0.000000e+00 : f32
    %6 = vector.broadcast %cst_7 : f32 to vector<8x128xf32>
    %7 = arith.maximumf %5, %6 : vector<8x128xf32>
    %c0_8 = arith.constant 0 : index
    %c0_9 = arith.constant 0 : index
    %c0_10 = arith.constant 0 : index
    %8 = vector.load %arg4[%c0_8, %c0_9, %c0_10] : memref<1x8x128xf32, #tpu.memory_space<vmem>>, vector<1x8x128xf32>
    %9 = vector.shape_cast %8 : vector<1x8x128xf32> to vector<8x128xf32>
    %10 = vector.shape_cast %7 : vector<8x128xf32> to vector<1x8x128xf32>
    tpu.vector_store %arg4[%c0_8, %c0_9, %c0_10], %10 {strides = array<i32>} : memref<1x8x128xf32, #tpu.memory_space<vmem>>, vector<1x8x128xf32>,
    return
  }
  func.func @transform_0(%arg0: i32) -> (i32, i32) {
    %c0_i32 = arith.constant 0 : i32
    %c0_i32_0 = arith.constant 0 : i32
    %c0_i32_1 = arith.constant 0 : i32
    return %c0_i32, %c0_i32_0 : i32, i32
  }
  func.func @transform_1(%arg0: i32) -> (i32, i32, i32) {
    %c0_i32 = arith.constant 0 : i32
    %c0_i32_0 = arith.constant 0 : i32
    %c0_i32_1 = arith.constant 0 : i32
    return %arg0, %c0_i32, %c0_i32_0 : i32, i32, i32
  }
  func.func @transform_2(%arg0: i32) -> (i32, i32) {
    %c0_i32 = arith.constant 0 : i32
    %c0_i32_0 = arith.constant 0 : i32
    %c0_i32_1 = arith.constant 0 : i32
    return %c0_i32, %c0_i32_0 : i32, i32
  }
  func.func @transform_3(%arg0: i32) -> (i32, i32, i32) {
    %c0_i32 = arith.constant 0 : i32
    %c0_i32_0 = arith.constant 0 : i32
    %c0_i32_1 = arith.constant 0 : i32
    return %arg0, %c0_i32, %c0_i32_0 : i32, i32, i32
  }
}

</mosaic_0001>

<llo_original>
// kernel: tpu_custom_call.1
$region0: #{tpu_custom_call.1}
  #allocation0 [shape = 'u32[]', space=smem, size = 0x4, offset = 0x4, fixed_abs, tag = 'smem constant byte address 0x4 - core index']
  #allocation1 [shape = 'u32[144,128]{1,0:T(1,128)}', space=vmem, size = 0x12000, scoped, tag = 'internal scratch']
  %s0 = inlined_call_operand.hbm [shape: f32[8,8], index: 0, kind: input, shape index: {}]
  %s1 = inlined_call_operand.hbm [shape: f32[1,8,16], index: 1, kind: input, shape index: {}]
  %s2 = inlined_call_operand.hbm [shape: f32[16,128], index: 2, kind: input, shape index: {}]
  %s3 = inlined_call_operand.hbm [shape: f32[1,8,128], index: 3, kind: output, shape index: {}]
  %s4 = sld [smem:[#allocation0]]
  $region34: #{tpu_custom_call.1} parent=0
    _
  %s6 = ssub.s32 1, %s4
  %s7 = scalar_select 0, %s6, %s4
  $region1: #{tpu_custom_call.1} parent=0
    #allocation2 [shape = 'u8[4096]{0}', space=vmem, size = 0x1000, scoped, tag = 'input window, operand 0, single buffered']
    #allocation3 [shape = 's32[1]{0}', space=sflag, size = 0x4, scoped, tag = 'scoped memory for tpu_custom_call.1']
    #allocation4 [shape = 's32[1]{0}', space=sflag, size = 0x4, scoped, tag = 'scoped memory for tpu_custom_call.1']
    #allocation5 [shape = 'u8[4096]{0}', space=vmem, size = 0x1000, scoped, tag = 'input window, operand 1, single buffered']
    #allocation6 [shape = 's32[1]{0}', space=sflag, size = 0x4, scoped, tag = 'scoped memory for tpu_custom_call.1']
    #allocation7 [shape = 'u8[8192]{0}', space=vmem, size = 0x2000, scoped, tag = 'input window, operand 2, single buffered']
    #allocation8 [shape = 'u8[4096]{0}', space=vmem, size = 0x1000, scoped, tag = 'output window, operand 0, single buffered']
    %8 = vsyncpa [#allocation3], 0
    %9 = vsyncpa [#allocation6], 0
    %10 = vsyncpa [#allocation4], 0
    // Predicated region
    $region2: #{tpu_custom_call.1} parent=1 // pred_check
      _
    $region3: #{tpu_custom_call.1} parent=1 // pred_check_branch
      %12 = sbr.rel (0) target = $region5
    $region4: #{tpu_custom_call.1} parent=1 // pred_region
      %s14 = ssub.s32 128, 128
      %15 = vsyncadd [#allocation3], %s14
      %s17 = sshll.u32 [#allocation2], 4
      %s18 = int_to_ptr.vmem [resolvable:$true] %s17
      %20 = dma.hbm_to_vmem [thread:$0]  %s0, 128, %s18, [#allocation3]
    $region5: #{tpu_custom_call.1} parent=1 // pred_fallthru
      _
    // Predicated region
    $region6: #{tpu_custom_call.1} parent=1 // pred_check
      _
    $region7: #{tpu_custom_call.1} parent=1 // pred_check_branch
      %22 = sbr.rel (0) target = $region9
    $region8: #{tpu_custom_call.1} parent=1 // pred_region
      %s24 = ssub.s32 128, 128
      %25 = vsyncadd [#allocation6], %s24
      %s27 = sshll.u32 [#allocation5], 4
      %s28 = int_to_ptr.vmem [resolvable:$true] %s27
      %30 = dma.hbm_to_vmem [thread:$0]  %s1, 128, %s28, [#allocation6]
    $region9: #{tpu_custom_call.1} parent=1 // pred_fallthru
      _
    // Predicated region
    $region10: #{tpu_custom_call.1} parent=1 // pred_check
      _
    $region11: #{tpu_custom_call.1} parent=1 // pred_check_branch
      %32 = sbr.rel (0) target = $region13
    $region12: #{tpu_custom_call.1} parent=1 // pred_region
      %s34 = ssub.s32 256, 256
      %35 = vsyncadd [#allocation6], %s34
      %s36 = sshll.u32 [#allocation7], 4
      %s37 = int_to_ptr.vmem [resolvable:$true] %s36
      %42 = dma.hbm_to_vmem [thread:$0]  %s2, 256, %s37, [#allocation6], 128, 128, 8
    $region13: #{tpu_custom_call.1} parent=1 // pred_fallthru
      _
    // Predicated region
    $region14: #{tpu_custom_call.1} parent=1 // pred_check
      _
    $region15: #{tpu_custom_call.1} parent=1 // pred_check_branch
      %44 = sbr.rel (0) target = $region17
    $region16: #{tpu_custom_call.1} parent=1 // pred_region
      %45 = dma.done [#allocation3], 128
    $region17: #{tpu_custom_call.1} parent=1 // pred_fallthru
      _
    // Predicated region
    $region18: #{tpu_custom_call.1} parent=1 // pred_check
      _
    $region19: #{tpu_custom_call.1} parent=1 // pred_check_branch
      %47 = sbr.rel (0) target = $region21
    $region20: #{tpu_custom_call.1} parent=1 // pred_region
      %48 = dma.done [#allocation6], 128
    $region21: #{tpu_custom_call.1} parent=1 // pred_fallthru
      _
    // Predicated region
    $region22: #{tpu_custom_call.1} parent=1 // pred_check
      _
    $region23: #{tpu_custom_call.1} parent=1 // pred_check_branch
      %50 = sbr.rel (0) target = $region25
    $region24: #{tpu_custom_call.1} parent=1 // pred_region
      %51 = dma.done [#allocation6], 256
    $region25: #{tpu_custom_call.1} parent=1 // pred_fallthru
      _
    %v52 = vld [vmem:[#allocation2] sm:$0xff]
    %v53 = vld [vmem:[#allocation5] sm:$0xff]
    %v54 = vld [vmem:[#allocation7] sm:$0xff]
    %v55 = vld [vmem:[#allocation7 + $0x8] sm:$0xff]
    %vm56 = vcmask 64512
    %v58 = vsel %vm56, %v52, 0
    %60 = vmatprep.subr.mxu0 0.0
    %61 = vmatpush1.msra.mxu0 0.0
    %62 = vmatprep.subr.mxu0 0.0
    %63 = vmatpush1.msra.mxu0 0.0
    %64 = vmatprep.subr.mxu0 0.0
    %65 = vmatpush1.msra.mxu0 0.0
    %66 = vmatprep.subr.mxu0 0.0
    %67 = vmatpush1.msra.mxu0 0.0
    %68 = vmatprep.subr.mxu0 0.0
    %69 = vmatpush1.msra.mxu0 0.0
    %70 = vmatprep.subr.mxu0 0.0
    %71 = vmatpush1.msra.mxu0 0.0
    %72 = vmatprep.subr.mxu0 0.0
    %73 = vmatpush1.msra.mxu0 0.0
    %74 = vmatprep.subr.mxu0 0.0
    %75 = vmatpush1.msra.mxu0 0.0
    %76 = vmatprep.subr.mxu0 0.0
    %77 = vmatpush1.msra.mxu0 0.0
    %78 = vmatprep.subr.mxu0 0.0
    %79 = vmatpush1.msra.mxu0 0.0
    %80 = vmatprep.subr.mxu0 0.0
    %81 = vmatpush1.msra.mxu0 0.0
    %82 = vmatprep.subr.mxu0 0.0
    %83 = vmatpush1.msra.mxu0 0.0
    %84 = vmatprep.subr.mxu0 0.0
    %85 = vmatpush1.msra.mxu0 0.0
    %86 = vmatprep.subr.mxu0 0.0
    %87 = vmatpush1.msra.mxu0 0.0
    %88 = vmatprep.subr.mxu0 0.0
    %89 = vmatpush1.msra.mxu0 0.0
    %90 = vmatprep.subr.mxu0 0.0
    %91 = vmatpush1.msra.mxu0 %v53
    %92 = vmatprep.subr.mxu0 0.0
    %93 = vmatpush2.msra.mxu0 0.0
    %94 = vmatprep.subr.mxu0 0.0
    %95 = vmatpush2.msra.mxu0 0.0
    %96 = vmatprep.subr.mxu0 0.0
    %97 = vmatpush2.msra.mxu0 0.0
    %98 = vmatprep.subr.mxu0 0.0
    %99 = vmatpush2.msra.mxu0 0.0
    %100 = vmatprep.subr.mxu0 0.0
    %101 = vmatpush2.msra.mxu0 0.0
    %102 = vmatprep.subr.mxu0 0.0
    %103 = vmatpush2.msra.mxu0 0.0
    %104 = vmatprep.subr.mxu0 0.0
    %105 = vmatpush2.msra.mxu0 0.0
    %106 = vmatprep.subr.mxu0 0.0
    %107 = vmatpush2.msra.mxu0 0.0
    %108 = vmatprep.subr.mxu0 0.0
    %109 = vmatpush2.msra.mxu0 0.0
    %110 = vmatprep.subr.mxu0 0.0
    %111 = vmatpush2.msra.mxu0 0.0
    %112 = vmatprep.subr.mxu0 0.0
    %113 = vmatpush2.msra.mxu0 0.0
    %114 = vmatprep.subr.mxu0 0.0
    %115 = vmatpush2.msra.mxu0 0.0
    %116 = vmatprep.subr.mxu0 0.0
    %117 = vmatpush2.msra.mxu0 0.0
    %118 = vmatprep.subr.mxu0 0.0
    %119 = vmatpush2.msra.mxu0 0.0
    %120 = vmatprep.subr.mxu0 0.0
    %121 = vmatpush2.msra.mxu0 0.0
    %122 = vmatprep.subr.mxu0 0.0
    %123 = vmatpush2.msra.mxu0 0.0
    %124 = vmatprep.mubr.f32.mxu0 0.0
    %125 = vmatmul.mubr.f32.gmra.mxu0 %v58
    %v126 = vpop.f32.mrf.mxu0
    %v127 = vadd.f32 0.0, %v126
    %v128 = vpop.f32.mrf.mxu0
    %129 = vdwg.mxu0
    %vm130 = vcmask 130048
    %v132 = vsel %vm130, %v127, 0
    %134 = vmatprep.subr.mxu0 0.0
    %135 = vmatpush1.msra.mxu0 0.0
    %136 = vmatprep.subr.mxu0 0.0
    %137 = vmatpush1.msra.mxu0 0.0
    %138 = vmatprep.subr.mxu0 0.0
    %139 = vmatpush1.msra.mxu0 0.0
    %140 = vmatprep.subr.mxu0 0.0
    %141 = vmatpush1.msra.mxu0 0.0
    %142 = vmatprep.subr.mxu0 0.0
    %143 = vmatpush1.msra.mxu0 0.0
    %144 = vmatprep.subr.mxu0 0.0
    %145 = vmatpush1.msra.mxu0 0.0
    %146 = vmatprep.subr.mxu0 0.0
    %147 = vmatpush1.msra.mxu0 0.0
    %148 = vmatprep.subr.mxu0 0.0
    %149 = vmatpush1.msra.mxu0 0.0
    %150 = vmatprep.subr.mxu0 0.0
    %151 = vmatpush1.msra.mxu0 0.0
    %152 = vmatprep.subr.mxu0 0.0
    %153 = vmatpush1.msra.mxu0 0.0
    %154 = vmatprep.subr.mxu0 0.0
    %155 = vmatpush1.msra.mxu0 0.0
    %156 = vmatprep.subr.mxu0 0.0
    %157 = vmatpush1.msra.mxu0 0.0
    %158 = vmatprep.subr.mxu0 0.0
    %159 = vmatpush1.msra.mxu0 0.0
    %160 = vmatprep.subr.mxu0 0.0
    %161 = vmatpush1.msra.mxu0 0.0
    %162 = vmatprep.subr.mxu0 0.0
    %163 = vmatpush1.msra.mxu0 %v55
    %164 = vmatprep.subr.mxu0 0.0
    %165 = vmatpush1.msra.mxu0 %v54
    %166 = vmatprep.subr.mxu0 0.0
    %167 = vmatpush2.msra.mxu0 0.0
    %168 = vmatprep.subr.mxu0 0.0
    %169 = vmatpush2.msra.mxu0 0.0
    %170 = vmatprep.subr.mxu0 0.0
    %171 = vmatpush2.msra.mxu0 0.0
    %172 = vmatprep.subr.mxu0 0.0
    %173 = vmatpush2.msra.mxu0 0.0
    %174 = vmatprep.subr.mxu0 0.0
    %175 = vmatpush2.msra.mxu0 0.0
    %176 = vmatprep.subr.mxu0 0.0
    %177 = vmatpush2.msra.mxu0 0.0
    %178 = vmatprep.subr.mxu0 0.0
    %179 = vmatpush2.msra.mxu0 0.0
    %180 = vmatprep.subr.mxu0 0.0
    %181 = vmatpush2.msra.mxu0 0.0
    %182 = vmatprep.subr.mxu0 0.0
    %183 = vmatpush2.msra.mxu0 0.0
    %184 = vmatprep.subr.mxu0 0.0
    %185 = vmatpush2.msra.mxu0 0.0
    %186 = vmatprep.subr.mxu0 0.0
    %187 = vmatpush2.msra.mxu0 0.0
    %188 = vmatprep.subr.mxu0 0.0
    %189 = vmatpush2.msra.mxu0 0.0
    %190 = vmatprep.subr.mxu0 0.0
    %191 = vmatpush2.msra.mxu0 0.0
    %192 = vmatprep.subr.mxu0 0.0
    %193 = vmatpush2.msra.mxu0 0.0
    %194 = vmatprep.subr.mxu0 0.0
    %195 = vmatpush2.msra.mxu0 0.0
    %196 = vmatprep.subr.mxu0 0.0
    %197 = vmatpush2.msra.mxu0 0.0
    %198 = vmatprep.mubr.f32.mxu0 0.0
    %199 = vmatmul.mubr.f32.gmra.mxu0 %v132
    %v200 = vpop.f32.mrf.mxu0
    %v201 = vadd.f32 0.0, %v200
    %v202 = vpop.f32.mrf.mxu0
    %203 = vdwg.mxu0
    %v204 = vmax.f32 %v201, 0.0
    %205 = vst [vmem:[#allocation8] sm:$0xff] %v204
    // Predicated region
    $region26: #{tpu_custom_call.1} parent=1 // pred_check
      _
    $region27: #{tpu_custom_call.1} parent=1 // pred_check_branch
      %207 = sbr.rel (0) target = $region29
    $region28: #{tpu_custom_call.1} parent=1 // pred_region
      %s209 = ssub.s32 128, 128
      %210 = vsyncadd [#allocation4], %s209
      %s212 = sshll.u32 [#allocation8], 4
      %s213 = int_to_ptr.vmem [resolvable:$true] %s212
      %215 = dma.vmem_to_hbm [thread:$0]  %s213, 128, %s3, [#allocation4]
    $region29: #{tpu_custom_call.1} parent=1 // pred_fallthru
      _
    // Predicated region
    $region30: #{tpu_custom_call.1} parent=1 // pred_check
      _
    $region31: #{tpu_custom_call.1} parent=1 // pred_check_branch
      %217 = sbr.rel (0) target = $region33
    $region32: #{tpu_custom_call.1} parent=1 // pred_region
      %218 = dma.done [#allocation4], 128
    $region33: #{tpu_custom_call.1} parent=1 // pred_fallthru
      _
    %219 = vsyncpa [#allocation3], 1
    %220 = vsyncpa [#allocation6], 1
    %221 = vsyncpa [#allocation4], 1

</llo_original>
